<compile_context>
chip_gen: v6e
topology: v6e:2x2x1
jax: 0.10.0
libtpu: 0.0.40
codegen_flags: <defaults>
</compile_context>

<pallas_src>
import functools

import jax
import jax.numpy as jnp
from jax import lax
from jax.experimental import pallas as pl
from jax.experimental.pallas import tpu as pltpu


# --------------------------------------------------------------------------------------
# Kernels
# --------------------------------------------------------------------------------------

def _bn_fused_kernel(x_ref, w_ref, b_ref, rm_ref, rv_ref,
                     y_ref, nrm_ref, nrv_ref, *, eps, momentum, m_count):
    """Single-read path: whole (N, C, HW) tensor resident in VMEM.

    Exact two-pass statistics (mean, then var of centered data) + normalization.
    All per-channel vectors are (C, 1) so every broadcast is a cheap lane broadcast.
    """
    xf = x_ref[...].astype(jnp.float32)                                   # (N, C, HW)
    inv_m = 1.0 / float(m_count)

    s = jnp.sum(jnp.sum(xf, axis=2, keepdims=True), axis=0, keepdims=True)  # (1, C, 1)
    mean = s * inv_m
    xc = xf - mean
    ss = jnp.sum(jnp.sum(xc * xc, axis=2, keepdims=True), axis=0, keepdims=True)
    var = ss * inv_m                                                        # biased

    inv = lax.rsqrt(var + eps)                                              # EUP rsqrt
    w = w_ref[...].astype(jnp.float32)[None, :, :]                          # (1, C, 1)
    b = b_ref[...].astype(jnp.float32)[None, :, :]
    y_ref[...] = (xc * (w * inv) + b).astype(y_ref.dtype)

    bessel = float(m_count) / float(max(m_count - 1, 1))                    # guard M==1
    nrm_ref[...] = ((1.0 - momentum) * rm_ref[...].astype(jnp.float32)
                    + momentum * mean[0])
    nrv_ref[...] = ((1.0 - momentum) * rv_ref[...].astype(jnp.float32)
                    + momentum * var[0] * bessel)


def _bn_stats_kernel(rm_ref, x_ref, out_ref):
    """Streaming pass 1: per-batch-block partial sums of (x - running_mean).

    rm_ref:  (C, 1) pilot mean (running_mean) — sublane layout, lane-broadcast only.
    x_ref:   (nb, C, tl) tile of the zero-padded (N, C, HW_pad) view.
    out_ref: (2, C) fp32 partial slab for this batch block (row 0 = sum, row 1 = sumsq),
             VMEM-resident across the spatial ("arbitrary") grid axis.
    """
    @pl.when(pl.program_id(1) == 0)
    def _init():
        out_ref[...] = jnp.zeros_like(out_ref)

    xf = x_ref[...].astype(jnp.float32)                                   # (nb, C, tl)
    xc = xf - rm_ref[...].astype(jnp.float32)[None, :, :]                 # pilot-centered
    s = jnp.sum(jnp.sum(xc, axis=2), axis=0, keepdims=True)               # (1, C)
    ss = jnp.sum(jnp.sum(xc * xc, axis=2), axis=0, keepdims=True)         # (1, C)
    out_ref[0:1, :] += s
    out_ref[1:2, :] += ss


def _bn_norm_kernel(scale_ref, shift_ref, x_ref, y_ref):
    """Streaming pass 2: y = x * scale + shift (per channel).

    scale/shift are (C, 1) fp32 — same sublane layout as the x tile, so only a cheap
    lane broadcast is needed (no per-tile lane->sublane relayout).
    """
    scale = scale_ref[...][None, :, :]                                    # (1, C, 1)
    shift = shift_ref[...][None, :, :]
    y = x_ref[...].astype(jnp.float32) * scale + shift
    y_ref[...] = y.astype(y_ref.dtype)


# --------------------------------------------------------------------------------------
# Tiling helpers
# --------------------------------------------------------------------------------------

def _vmem_budgets():
    """Derive (per-tile byte budget, vmem_limit_bytes) from the chip's VMEM capacity."""
    vmem_cap = 64 * 1024 * 1024                      # conservative default (v7x per-TC)
    try:
        info = pltpu.get_tpu_info()
        cap = getattr(info, "vmem_capacity_bytes", None)
        if cap:
            vmem_cap = int(cap)
    except Exception:
        pass
    tile_budget = min(8 << 20, max(1 << 20, vmem_cap // 12))
    vmem_limit = min(vmem_cap - (16 << 20), 96 << 20)
    vmem_limit = max(vmem_limit, 32 << 20)
    return int(tile_budget), int(vmem_limit)


def _lane_tile(hw_pad, c, itemsize, budget):
    """Largest multiple-of-128 divisor of hw_pad with a single-row tile within budget."""
    k = hw_pad // 128
    for d in range(k, 0, -1):
        if k % d == 0 and c * d * 128 * itemsize <= budget:
            return d * 128
    return 128


def _batch_tile(n, c, tl, itemsize, budget):
    """Largest divisor of N keeping the (nb, C, tl) tile within budget; prefer >=2 batch
    blocks (when each block stays reasonably large) so pass 1's "parallel" axis can be
    split across both v7x TensorCores."""
    nb = 1
    for cand in range(n, 0, -1):
        if n % cand == 0 and cand * c * tl * itemsize <= budget:
            nb = cand
            break
    if nb == n and n >= 2:
        for cand in range(n // 2, 0, -1):
            if n % cand == 0 and cand * c * tl * itemsize >= (512 << 10):
                return cand
    return nb


# --------------------------------------------------------------------------------------
# Wrapper
# --------------------------------------------------------------------------------------

def batch_norm_2d(x, weight, bias, running_mean, running_var,
                  *, eps=1e-5, momentum=0.1, force_two_pass=False):
    """x: (N, C, H, W). Returns (y_nchw, new_running_mean, new_running_var)."""
    N, C, H, W = x.shape
    HW = H * W
    M = N * HW

    x3 = x.reshape(N, C, HW)                               # free, contiguous reshape
    wc = weight.reshape(C, 1)
    bc = bias.reshape(C, 1)
    rmc = running_mean.reshape(C, 1)
    rvc = running_var.reshape(C, 1)

    tile_budget, vmem_limit = _vmem_budgets()

    # ---------- Fused single-read path (x comfortably fits in VMEM) -------------------
    fused_limit_bytes = vmem_limit // 8
    if (not force_two_pass) and N * C * HW * 4 <= fused_limit_bytes:
        fused = functools.partial(_bn_fused_kernel, eps=eps, momentum=momentum,
                                  m_count=M)
        y3, nrm, nrv = pl.pallas_call(
            fused,
            out_shape=(jax.ShapeDtypeStruct((N, C, HW), x.dtype),
                       jax.ShapeDtypeStruct((C, 1), jnp.float32),
                       jax.ShapeDtypeStruct((C, 1), jnp.float32)),
            compiler_params=pltpu.CompilerParams(vmem_limit_bytes=vmem_limit),
        )(x3, wc, bc, rmc, rvc)
        return (y3.reshape(N, C, H, W),
                nrm.reshape(C).astype(running_mean.dtype),
                nrv.reshape(C).astype(running_var.dtype))

    # ---------- Streaming two-pass path ------------------------------------------------
    # Pad the spatial axis to a multiple of 128 so every store is lane-dense.
    hw_pad = max(128, ((HW + 127) // 128) * 128)
    n_pad = hw_pad - HW
    x3p = jnp.pad(x3, ((0, 0), (0, 0), (0, n_pad))) if n_pad else x3

    itemsize = jnp.dtype(x.dtype).itemsize
    tl = _lane_tile(hw_pad, C, itemsize, tile_budget)
    nb = _batch_tile(N, C, tl, itemsize, tile_budget)
    n_blocks = N // nb
    grid = (n_blocks, hw_pad // tl)

    x_spec = pl.BlockSpec((nb, C, tl), lambda n, l: (n, 0, l))
    col_spec = pl.BlockSpec((C, 1), lambda n, l: (0, 0))

    # Pass 1: per-batch-block partial (sum, sumsq) of (x - running_mean).
    partials = pl.pallas_call(
        _bn_stats_kernel,
        out_shape=jax.ShapeDtypeStruct((n_blocks, 2, C), jnp.float32),
        grid=grid,
        in_specs=[col_spec, x_spec],
        out_specs=pl.BlockSpec((None, 2, C), lambda n, l: (n, 0, 0)),
        compiler_params=pltpu.CompilerParams(
            dimension_semantics=("parallel", "arbitrary"),
            vmem_limit_bytes=vmem_limit),
    )(rmc, x3p)

    # Tiny wrapper-side finalize (C-length vectors; XLA fuses this).
    rm32 = running_mean.astype(jnp.float32)
    rv32 = running_var.astype(jnp.float32)
    s = partials[:, 0, :].sum(axis=0)
    ss = partials[:, 1, :].sum(axis=0)
    # Zero-padded columns contributed (0 - rm) and rm^2 each; remove them exactly.
    n_pad_total = float(N * n_pad)
    s = s + n_pad_total * rm32
    ss = ss - n_pad_total * rm32 * rm32
    d = s / M
    mean = rm32 + d
    var = jnp.maximum(ss / M - d * d, 0.0)                  # biased variance
    inv = 1.0 / jnp.sqrt(var + eps)
    w32 = weight.astype(jnp.float32)
    b32 = bias.astype(jnp.float32)
    scale = w32 * inv
    shift = b32 - mean * scale
    bessel = float(M) / float(max(M - 1, 1))                # PyTorch raises for M==1
    new_rm = (1.0 - momentum) * rm32 + momentum * mean
    new_rv = (1.0 - momentum) * rv32 + momentum * var * bessel

    # Pass 2: normalize; both axes "parallel" (v7x shards across its 2 TensorCores).
    y3p = pl.pallas_call(
        _bn_norm_kernel,
        out_shape=jax.ShapeDtypeStruct((N, C, hw_pad), x.dtype),
        grid=grid,
        in_specs=[col_spec, col_spec, x_spec],
        out_specs=x_spec,
        compiler_params=pltpu.CompilerParams(
            dimension_semantics=("parallel", "parallel"),
            vmem_limit_bytes=vmem_limit),
    )(scale.reshape(C, 1), shift.reshape(C, 1), x3p)

    y3 = y3p[:, :, :HW] if n_pad else y3p
    return (y3.reshape(N, C, H, W),
            new_rm.astype(running_mean.dtype),
            new_rv.astype(running_var.dtype))


# --------------------------------------------------------------------------------------
# Reference + test
# --------------------------------------------------------------------------------------

def _reference(x, weight, bias, running_mean, running_var, eps, momentum):
    # Plain-JAX reference mirroring F.batch_norm(training=True).
    mean = jnp.mean(x, axis=(0, 2, 3))
    var = jnp.var(x, axis=(0, 2, 3))                     # biased
    M = x.shape[0] * x.shape[2] * x.shape[3]
    y = ((x - mean[None, :, None, None])
         / jnp.sqrt(var[None, :, None, None] + eps)
         * weight[None, :, None, None] + bias[None, :, None, None])
    nrm = (1 - momentum) * running_mean + momentum * mean
    nrv = (1 - momentum) * running_var + momentum * var * (M / (M - 1))
    return y, nrm, nrv


if __name__ == "__main__":
    key = jax.random.PRNGKey(0)
    kx, kw, kx2, krm, krv = jax.random.split(key, 5)

    eps, momentum = 1e-5, 0.1

    # Case 1: (2, 4, 16, 16) — default dispatch (fused single-read path).
    N, C, H, W = 2, 4, 16, 16
    x = jax.random.normal(kx, (N, C, H, W), dtype=jnp.float32)
    # Deterministic parameter init matching reset_parameters():
    #   weight ~ U[0,1), bias = 0, running_mean = 0, running_var = 1.
    weight = jax.random.uniform(kw, (C,), dtype=jnp.float32)
    bias = jnp.zeros((C,), dtype=jnp.float32)
    rm = jnp.zeros((C,), dtype=jnp.float32)
    rv = jnp.ones((C,), dtype=jnp.float32)

    y, nrm, nrv = batch_norm_2d(x, weight, bias, rm, rv, eps=eps, momentum=momentum)
    jax.block_until_ready((y, nrm, nrv))
    y_r, nrm_r, nrv_r = _reference(x, weight, bias, rm, rv, eps, momentum)
    assert jnp.allclose(y, y_r, atol=1e-4, rtol=1e-4)
    assert jnp.allclose(nrm, nrm_r, atol=1e-5, rtol=1e-5)
    assert jnp.allclose(nrv, nrv_r, atol=1e-5, rtol=1e-5)

    # Case 2: same input through the streaming two-pass path.
    y2, nrm2, nrv2 = batch_norm_2d(x, weight, bias, rm, rv, eps=eps,
                                   momentum=momentum, force_two_pass=True)
    jax.block_until_ready((y2, nrm2, nrv2))
    assert jnp.allclose(y2, y_r, atol=1e-4, rtol=1e-4)
    assert jnp.allclose(nrm2, nrm_r, atol=1e-5, rtol=1e-5)
    assert jnp.allclose(nrv2, nrv_r, atol=1e-5, rtol=1e-5)

    # Case 3: spatial size not a multiple of 128 + non-trivial running stats
    # (exercises lane padding, the exact padding correction and pilot centering).
    N3, C3, H3, W3 = 2, 4, 10, 10
    xb = jax.random.normal(kx2, (N3, C3, H3, W3), dtype=jnp.float32)
    wb = jax.random.uniform(kw, (C3,), dtype=jnp.float32)
    bb = 0.1 * jnp.ones((C3,), dtype=jnp.float32)
    rmb = 0.5 * jax.random.normal(krm, (C3,), dtype=jnp.float32)
    rvb = 0.5 + jax.random.uniform(krv, (C3,), dtype=jnp.float32)
    y3, nrm3, nrv3 = batch_norm_2d(xb, wb, bb, rmb, rvb, eps=eps,
                                   momentum=momentum, force_two_pass=True)
    jax.block_until_ready((y3, nrm3, nrv3))
    y3_r, nrm3_r, nrv3_r = _reference(xb, wb, bb, rmb, rvb, eps, momentum)
    assert jnp.allclose(y3, y3_r, atol=1e-4, rtol=1e-4)
    assert jnp.allclose(nrm3, nrm3_r, atol=1e-5, rtol=1e-5)
    assert jnp.allclose(nrv3, nrv3_r, atol=1e-5, rtol=1e-5)

    print("KERNEL_OK")
</pallas_src>

<mosaic_0001>
module attributes {stable_mosaic.version = 11 : i64} {
  func.func @_bn_fused_kernel(%arg0: memref<2x4x256xf32, #tpu.memory_space<vmem>>, %arg1: memref<4x1xf32, #tpu.memory_space<vmem>>, %arg2: memref<4x1xf32, #tpu.memory_space<vmem>>, %arg3: memref<4x1xf32, #tpu.memory_space<vmem>>, %arg4: memref<4x1xf32, #tpu.memory_space<vmem>>, %arg5: memref<2x4x256xf32, #tpu.memory_space<vmem>>, %arg6: memref<4x1xf32, #tpu.memory_space<vmem>>, %arg7: memref<4x1xf32, #tpu.memory_space<vmem>>) attributes {dimension_semantics = [], scalar_prefetch = 0 : i64, scratch_operands = 0 : i64, tpu.core_type = #tpu.core_type<tc>} {
    %c0 = arith.constant 0 : index
    %c0_0 = arith.constant 0 : index
    %c0_1 = arith.constant 0 : index
    %0 = vector.load %arg0[%c0, %c0_0, %c0_1] : memref<2x4x256xf32, #tpu.memory_space<vmem>>, vector<2x4x256xf32>
    %cst = arith.constant dense<0.000000e+00> : vector<2x4xf32>
    %1 = vector.multi_reduction <add>, %0, %cst [2] : vector<2x4x256xf32> to vector<2x4xf32>
    %2 = vector.shape_cast %1 : vector<2x4xf32> to vector<2x4x1xf32>
    %cst_2 = arith.constant dense<0.000000e+00> : vector<4x1xf32>
    %3 = vector.multi_reduction <add>, %2, %cst_2 [0] : vector<2x4x1xf32> to vector<4x1xf32>
    %4 = vector.shape_cast %3 : vector<4x1xf32> to vector<1x4x1xf32>
    %cst_3 = arith.constant 0.001953125 : f32
    %5 = vector.broadcast %cst_3 : f32 to vector<1x4x1xf32>
    %6 = arith.mulf %4, %5 : vector<1x4x1xf32>
    %7 = vector.broadcast %6 : vector<1x4x1xf32> to vector<2x4x256xf32>
    %8 = arith.subf %0, %7 : vector<2x4x256xf32>
    %9 = arith.mulf %8, %8 : vector<2x4x256xf32>
    %cst_4 = arith.constant dense<0.000000e+00> : vector<2x4xf32>
    %10 = vector.multi_reduction <add>, %9, %cst_4 [2] : vector<2x4x256xf32> to vector<2x4xf32>
    %11 = vector.shape_cast %10 : vector<2x4xf32> to vector<2x4x1xf32>
    %cst_5 = arith.constant dense<0.000000e+00> : vector<4x1xf32>
    %12 = vector.multi_reduction <add>, %11, %cst_5 [0] : vector<2x4x1xf32> to vector<4x1xf32>
    %13 = vector.shape_cast %12 : vector<4x1xf32> to vector<1x4x1xf32>
    %cst_6 = arith.constant 0.001953125 : f32
    %14 = vector.broadcast %cst_6 : f32 to vector<1x4x1xf32>
    %15 = arith.mulf %13, %14 : vector<1x4x1xf32>
    %cst_7 = arith.constant 9.99999974E-6 : f32
    %16 = vector.broadcast %cst_7 : f32 to vector<1x4x1xf32>
    %17 = arith.addf %15, %16 : vector<1x4x1xf32>
    %18 = math.rsqrt %17 : vector<1x4x1xf32>
    %c0_8 = arith.constant 0 : index
    %c0_9 = arith.constant 0 : index
    %19 = vector.load %arg1[%c0_8, %c0_9] : memref<4x1xf32, #tpu.memory_space<vmem>>, vector<4x1xf32>
    %20 = vector.shape_cast %19 : vector<4x1xf32> to vector<1x4x1xf32>
    %c0_10 = arith.constant 0 : index
    %c0_11 = arith.constant 0 : index
    %21 = vector.load %arg2[%c0_10, %c0_11] : memref<4x1xf32, #tpu.memory_space<vmem>>, vector<4x1xf32>
    %22 = vector.shape_cast %21 : vector<4x1xf32> to vector<1x4x1xf32>
    %23 = arith.mulf %20, %18 : vector<1x4x1xf32>
    %24 = vector.broadcast %23 : vector<1x4x1xf32> to vector<2x4x256xf32>
    %25 = arith.mulf %8, %24 : vector<2x4x256xf32>
    %26 = vector.broadcast %22 : vector<1x4x1xf32> to vector<2x4x256xf32>
    %27 = arith.addf %25, %26 : vector<2x4x256xf32>
    %c0_12 = arith.constant 0 : index
    %c0_13 = arith.constant 0 : index
    %c0_14 = arith.constant 0 : index
    %28 = vector.load %arg5[%c0_12, %c0_13, %c0_14] : memref<2x4x256xf32, #tpu.memory_space<vmem>>, vector<2x4x256xf32>
    tpu.vector_store %arg5[%c0_12, %c0_13, %c0_14], %27 {strides = array<i32>} : memref<2x4x256xf32, #tpu.memory_space<vmem>>, vector<2x4x256xf32>,
    %c0_15 = arith.constant 0 : index
    %c0_16 = arith.constant 0 : index
    %29 = vector.load %arg3[%c0_15, %c0_16] : memref<4x1xf32, #tpu.memory_space<vmem>>, vector<4x1xf32>
    %cst_17 = arith.constant 0.899999976 : f32
    %30 = vector.broadcast %cst_17 : f32 to vector<4x1xf32>
    %31 = arith.mulf %30, %29 : vector<4x1xf32>
    %32 = vector.shape_cast %6 : vector<1x4x1xf32> to vector<4x1xf32>
    %cst_18 = arith.constant 1.000000e-01 : f32
    %33 = vector.broadcast %cst_18 : f32 to vector<4x1xf32>
    %34 = arith.mulf %33, %32 : vector<4x1xf32>
    %35 = arith.addf %31, %34 : vector<4x1xf32>
    %c0_19 = arith.constant 0 : index
    %c0_20 = arith.constant 0 : index
    %36 = vector.load %arg6[%c0_19, %c0_20] : memref<4x1xf32, #tpu.memory_space<vmem>>, vector<4x1xf32>
    tpu.vector_store %arg6[%c0_19, %c0_20], %35 {strides = array<i32>} : memref<4x1xf32, #tpu.memory_space<vmem>>, vector<4x1xf32>,
    %c0_21 = arith.constant 0 : index
    %c0_22 = arith.constant 0 : index
    %37 = vector.load %arg4[%c0_21, %c0_22] : memref<4x1xf32, #tpu.memory_space<vmem>>, vector<4x1xf32>
    %cst_23 = arith.constant 0.899999976 : f32
    %38 = vector.broadcast %cst_23 : f32 to vector<4x1xf32>
    %39 = arith.mulf %38, %37 : vector<4x1xf32>
    %40 = vector.shape_cast %15 : vector<1x4x1xf32> to vector<4x1xf32>
    %cst_24 = arith.constant 1.000000e-01 : f32
    %41 = vector.broadcast %cst_24 : f32 to vector<4x1xf32>
    %42 = arith.mulf %41, %40 : vector<4x1xf32>
    %cst_25 = arith.constant 1.00195694 : f32
    %43 = vector.broadcast %cst_25 : f32 to vector<4x1xf32>
    %44 = arith.mulf %42, %43 : vector<4x1xf32>
    %45 = arith.addf %39, %44 : vector<4x1xf32>
    %c0_26 = arith.constant 0 : index
    %c0_27 = arith.constant 0 : index
    %46 = vector.load %arg7[%c0_26, %c0_27] : memref<4x1xf32, #tpu.memory_space<vmem>>, vector<4x1xf32>
    tpu.vector_store %arg7[%c0_26, %c0_27], %45 {strides = array<i32>} : memref<4x1xf32, #tpu.memory_space<vmem>>, vector<4x1xf32>,
    return
  }
}

</mosaic_0001>

<llo_original>
// kernel: tpu_custom_call.1
$region0: #{tpu_custom_call.1}
  #allocation0 [shape = 'u32[]', space=smem, size = 0x4, offset = 0x4, fixed_abs, tag = 'smem constant byte address 0x4 - core index']
  #allocation1 [shape = 'u32[144,128]{1,0:T(1,128)}', space=vmem, size = 0x12000, scoped, tag = 'internal scratch']
  %s0 = inlined_call_operand.vmem [shape: f32[2,4,256], index: 0, kind: input, shape index: {}]
  %s1 = inlined_call_operand.vmem [shape: f32[4,1], index: 1, kind: input, shape index: {}]
  %s2 = inlined_call_operand.vmem [shape: f32[4,1], index: 2, kind: input, shape index: {}]
  %s3 = inlined_call_operand.vmem [shape: f32[4,1], index: 3, kind: input, shape index: {}]
  %s4 = inlined_call_operand.vmem [shape: f32[4,1], index: 4, kind: input, shape index: {}]
  %s5 = inlined_call_operand.hbm [shape: f32[2,4,256], index: 5, kind: output, shape index: {0}]
  %s6 = inlined_call_operand.vmem [shape: f32[4,1], index: 6, kind: output, shape index: {1}]
  %s7 = inlined_call_operand.vmem [shape: f32[4,1], index: 7, kind: output, shape index: {2}]
  %8 = xla_tuple %s5, %s6, %s7
  %s9 = sld [smem:[#allocation0]]
  $region46: #{tpu_custom_call.1} parent=0
    _
  %s11 = ssub.s32 1, %s9
  %s12 = scalar_select 0, %s11, %s9
  $region1: #{tpu_custom_call.1} parent=0
    #allocation2 [shape = 'u8[8192]{0}', space=vmem, size = 0x2000, scoped, tag = 'output window, operand 0, single buffered']
    #allocation3 [shape = 's32[1]{0}', space=sflag, size = 0x4, scoped, tag = 'scoped memory for tpu_custom_call.1']
    %13 = vsyncpa [#allocation3], 0
    // Predicated region
    $region2: #{tpu_custom_call.1} parent=1 // pred_check
      _
    $region3: #{tpu_custom_call.1} parent=1 // pred_check_branch
      %15 = sbr.rel (0) target = $region5
    $region4: #{tpu_custom_call.1} parent=1 // pred_region
      _
    $region5: #{tpu_custom_call.1} parent=1 // pred_fallthru
      _
    // Predicated region
    $region6: #{tpu_custom_call.1} parent=1 // pred_check
      _
    $region7: #{tpu_custom_call.1} parent=1 // pred_check_branch
      %17 = sbr.rel (0) target = $region9
    $region8: #{tpu_custom_call.1} parent=1 // pred_region
      _
    $region9: #{tpu_custom_call.1} parent=1 // pred_fallthru
      _
    // Predicated region
    $region10: #{tpu_custom_call.1} parent=1 // pred_check
      _
    $region11: #{tpu_custom_call.1} parent=1 // pred_check_branch
      %19 = sbr.rel (0) target = $region13
    $region12: #{tpu_custom_call.1} parent=1 // pred_region
      _
    $region13: #{tpu_custom_call.1} parent=1 // pred_fallthru
      _
    // Predicated region
    $region14: #{tpu_custom_call.1} parent=1 // pred_check
      _
    $region15: #{tpu_custom_call.1} parent=1 // pred_check_branch
      %21 = sbr.rel (0) target = $region17
    $region16: #{tpu_custom_call.1} parent=1 // pred_region
      _
    $region17: #{tpu_custom_call.1} parent=1 // pred_fallthru
      _
    // Predicated region
    $region18: #{tpu_custom_call.1} parent=1 // pred_check
      _
    $region19: #{tpu_custom_call.1} parent=1 // pred_check_branch
      %23 = sbr.rel (0) target = $region21
    $region20: #{tpu_custom_call.1} parent=1 // pred_region
      _
    $region21: #{tpu_custom_call.1} parent=1 // pred_fallthru
      _
    %v24 = vld [vmem:[%s0] sm:$0xff]
    %v25 = vld [vmem:[%s0 + $0x8] sm:$0xff]
    %v28 = vcombine.high %v24, %v24
    %v29 = vcombine.high %v25, %v25
    %vm32 = vcmask 1043456
    %v33 = vsel %vm32, %v24, 0.0
    %v34 = vsel %vm32, %v28, 0.0
    %v35 = vadd.f32 %v33, %v34
    %36 = vadd.xlane.f32.xlu0 %v35
    %v37 = vpop.xlane.xlu0 %36
    %v38 = vsel %vm32, %v25, 0.0
    %v39 = vsel %vm32, %v29, 0.0
    %v40 = vadd.f32 %v38, %v39
    %41 = vadd.xlane.f32.xlu0 %v40
    %v42 = vpop.xlane.xlu0 %41
    %v43 = vsel %vm32, %v37, 0.0
    %v44 = vsel %vm32, %v42, 0.0
    %v45 = vadd.f32 %v43, %v44
    %v46 = vmul.f32 %v45, 0.001953125
    %v49 = vunpack.c.l.s4 839922192
    %v50 = vunpack.c.0.s8 %v49
    %v51 = vlaneseq
    %v52 = vshrl.u32 %v51, 7
    %v53 = vsub.s32 %v50, %v52
    %v54 = vrot.slane %v46, %v53
    %v56 = vsub.f32 %v24, %v54
    %v57 = vsub.f32 %v25, %v54
    %v58 = vmul.f32 %v56, %v56
    %v59 = vmul.f32 %v57, %v57
    %v62 = vcombine.high %v58, %v58
    %v63 = vcombine.high %v59, %v59
    %v66 = vsel %vm32, %v58, 0.0
    %v67 = vsel %vm32, %v62, 0.0
    %v68 = vadd.f32 %v66, %v67
    %69 = vadd.xlane.f32.xlu0 %v68
    %v70 = vpop.xlane.xlu0 %69
    %v71 = vsel %vm32, %v59, 0.0
    %v72 = vsel %vm32, %v63, 0.0
    %v73 = vadd.f32 %v71, %v72
    %74 = vadd.xlane.f32.xlu0 %v73
    %v75 = vpop.xlane.xlu0 %74
    %v76 = vsel %vm32, %v70, 0.0
    %v77 = vsel %vm32, %v75, 0.0
    %v78 = vadd.f32 %v76, %v77
    %v79 = vmul.f32 %v78, 0.001953125
    %v80 = vadd.f32 %v79, 1e-05
    %v81 = vrsqrt.pop %v80
    %v82 = vld [vmem:[%s1] sm:$0xf]
    %v83 = vld [vmem:[%s2] sm:$0xf]
    %v84 = vmul.f32 %v82, %v81
    %86 = vset.pattern.permute.xlu0 0
    %87 = vperm.xlu0 %86, %v84
    %v88 = vpop.permute.xlu0 %87
    %v90 = vunpack.c.l.s4 839922192
    %v91 = vunpack.c.0.s8 %v90
    %v92 = vlaneseq
    %v93 = vshrl.u32 %v92, 7
    %v94 = vsub.s32 %v91, %v93
    %v95 = vrot.slane %v88, %v94
    %v97 = vmul.f32 %v56, %v95
    %v98 = vmul.f32 %v57, %v95
    %100 = vset.pattern.permute.xlu0 0
    %101 = vperm.xlu0 %100, %v83
    %v102 = vpop.permute.xlu0 %101
    %v104 = vunpack.c.l.s4 839922192
    %v105 = vunpack.c.0.s8 %v104
    %v106 = vlaneseq
    %v107 = vshrl.u32 %v106, 7
    %v108 = vsub.s32 %v105, %v107
    %v109 = vrot.slane %v102, %v108
    %v111 = vadd.f32 %v97, %v109
    %v112 = vadd.f32 %v98, %v109
    %113 = vst [vmem:[#allocation2] sm:$0xff] %v111
    %114 = vst [vmem:[#allocation2 + $0x8] sm:$0xff] %v112
    %v115 = vld [vmem:[%s3] sm:$0xf]
    %v116 = vmul.f32 %v115, 0.9
    %v117 = vmul.f32 %v46, 0.1
    %v118 = vadd.f32 %v116, %v117
    %vm119 = vcmask 3072
    %120 = vst.msk [vmem:[%s6] sm:$0xf] %vm119, %v118
    %v121 = vld [vmem:[%s4] sm:$0xf]
    %v122 = vmul.f32 %v121, 0.9
    %v123 = vmul.f32 %v79, 0.1
    %v124 = vmul.f32 %v123, 1.0019569
    %v125 = vadd.f32 %v122, %v124
    %126 = vst.msk [vmem:[%s7] sm:$0xf] %vm119, %v125
    // Predicated region
    $region22: #{tpu_custom_call.1} parent=1 // pred_check
      _
    $region23: #{tpu_custom_call.1} parent=1 // pred_check_branch
      %128 = sbr.rel (0) target = $region25
    $region24: #{tpu_custom_call.1} parent=1 // pred_region
      %s130 = ssub.s32 256, 256
      %131 = vsyncadd [#allocation3], %s130
      %s132 = sshll.u32 [#allocation2], 4
      %s133 = int_to_ptr.vmem [resolvable:$true] %s132
      %138 = dma.vmem_to_hbm [thread:$0]  %s133, 256, %s5, [#allocation3], 128, 128, 8
    $region25: #{tpu_custom_call.1} parent=1 // pred_fallthru
      _
    // Predicated region
    $region26: #{tpu_custom_call.1} parent=1 // pred_check
      _
    $region27: #{tpu_custom_call.1} parent=1 // pred_check_branch
      %140 = sbr.rel (0) target = $region29
    $region28: #{tpu_custom_call.1} parent=1 // pred_region
      _
    $region29: #{tpu_custom_call.1} parent=1 // pred_fallthru
      _
    // Predicated region
    $region30: #{tpu_custom_call.1} parent=1 // pred_check
      _
    $region31: #{tpu_custom_call.1} parent=1 // pred_check_branch
      %142 = sbr.rel (0) target = $region33
    $region32: #{tpu_custom_call.1} parent=1 // pred_region
      _
    $region33: #{tpu_custom_call.1} parent=1 // pred_fallthru
      _
    // Predicated region
    $region34: #{tpu_custom_call.1} parent=1 // pred_check
      _
    $region35: #{tpu_custom_call.1} parent=1 // pred_check_branch
      %144 = sbr.rel (0) target = $region37
    $region36: #{tpu_custom_call.1} parent=1 // pred_region
      %145 = dma.done [#allocation3], 256
    $region37: #{tpu_custom_call.1} parent=1 // pred_fallthru
      _
    // Predicated region
    $region38: #{tpu_custom_call.1} parent=1 // pred_check
      _
    $region39: #{tpu_custom_call.1} parent=1 // pred_check_branch
      %147 = sbr.rel (0) target = $region41
    $region40: #{tpu_custom_call.1} parent=1 // pred_region
      _
    $region41: #{tpu_custom_call.1} parent=1 // pred_fallthru
      _
    // Predicated region
    $region42: #{tpu_custom_call.1} parent=1 // pred_check
      _
    $region43: #{tpu_custom_call.1} parent=1 // pred_check_branch
      %149 = sbr.rel (0) target = $region45
    $region44: #{tpu_custom_call.1} parent=1 // pred_region
      _
    $region45: #{tpu_custom_call.1} parent=1 // pred_fallthru
      _
    %150 = vsyncpa [#allocation3], 1

</llo_original>
